<compile_context>
chip_gen: v6e
topology: v6e:2x2x1
jax: 0.10.0
libtpu: 0.0.40
codegen_flags: <defaults>
</compile_context>

<pallas_src>
import functools

import numpy as np

import jax
import jax.numpy as jnp
from jax.experimental import pallas as pl
from jax.experimental.pallas import tpu as pltpu


def _round_up(x: int, m: int) -> int:
    return ((x + m - 1) // m) * m


@functools.lru_cache(maxsize=16)
def _dft_basis(t_len: int, n_fft: int, kfreq: int, n_rfft: int, dtype_name: str):
    """Cached (2*kfreq, t_len) DFT basis for rfft(n=n_fft, norm='forward').

    Row k        :  cos(2*pi*k*t/N) / N   (real part)
    Row kfreq+k  : -sin(2*pi*k*t/N) / N   (imag part)
    Columns for bins k >= n_rfft (lane padding beyond Nyquist) are zeroed so
    they contribute no power — matching torch.fft.rfft which has no such bins.
    Zero padding of the time signal to N samples is implicit (t < t_len only).
    """
    t = np.arange(t_len, dtype=np.float64)[None, :]
    k = np.arange(kfreq, dtype=np.float64)[:, None]
    ang = 2.0 * np.pi * k * t / float(n_fft)
    valid = (k < n_rfft).astype(np.float64)
    cos_m = np.cos(ang) * valid / float(n_fft)
    sin_m = -np.sin(ang) * valid / float(n_fft)
    basis = np.concatenate([cos_m, sin_m], axis=0).astype(np.float32)
    return jnp.asarray(basis, dtype=jnp.dtype(dtype_name))


def _snr_kernel(sig_ref, basis_ref, loss_ref, *, bm, kfreq, min_idx, max_idx,
                wind_sz, idx_bits):
    basis = basis_ref[...]        # (2K, T)  — resident across grid steps
    sig = sig_ref[...]            # (T, 2*bm): cols [0:bm]=outputs, [bm:2bm]=targets

    # Single fused MXU matmul: real+imag spectra of both signals at once.
    spec = jnp.dot(basis, sig, preferred_element_type=jnp.float32)   # (2K, 2bm)

    # Tile-aligned slices (kfreq multiple of 128 on sublanes, bm multiple of
    # 128 on lanes) — no relayout copies.
    xr = spec[:kfreq, :bm]
    xi = spec[kfreq:, :bm]
    yr = spec[:kfreq, bm:]
    yi = spec[kfreq:, bm:]

    p1 = xr * xr + xi * xi        # |X|^2 (K, bm): frequency on sublanes, batch on lanes
    y2 = yr * yr + yi * yi        # |Y|^2

    k = jax.lax.broadcasted_iota(jnp.int32, (kfreq, bm), 0)
    band = (k >= min_idx) & (k < max_idx)

    # HRixs = argmax(|Y|^2[min_idx:max_idx]) in ONE cross-sublane reduce:
    # bitcast the non-negative power to int32 (order preserving), clear the
    # low idx_bits and pack the inverted bin index there.  Ties break to the
    # smallest bin (first maximum), like torch.argmax; NaN power wins the max
    # (same as torch treating NaN as maximal).
    idx_mod = 1 << idx_bits
    y2_bits = pltpu.bitcast(y2, jnp.int32)
    packed = jnp.where(band,
                       (y2_bits & jnp.int32(-idx_mod)) | ((idx_mod - 1) - k),
                       jnp.int32(-1))
    pmax = jnp.max(packed, axis=0, keepdims=True)              # (1, bm)
    hr = (idx_mod - 1) - (pmax & jnp.int32(idx_mod - 1))       # (1, bm) peak bin

    lo = hr - wind_sz
    hi = hr + wind_sz
    pulse_mask = (k >= lo) & (k < hi)
    other_mask = band & jnp.logical_not(pulse_mask)

    zeros = jnp.zeros_like(p1)
    pulse = jnp.sum(jnp.where(pulse_mask, p1, zeros), axis=0, keepdims=True)
    other = jnp.sum(jnp.where(other_mask, p1, zeros), axis=0, keepdims=True)

    # Lane-dense (1, bm) store — full-lane vst, no masked partial stores.
    loss_ref[...] = -10.0 * jnp.log10(pulse / (other + 1e-7))


def snr_loss_db_signals(outputs, targets, Fs=30, N=1024,
                        pulse_band=(45.0 / 60.0, 180.0 / 60.0),
                        block_rows=256, matmul_dtype=jnp.float32):
    """JAX/Pallas equivalent of SNRLoss_dB_Signals.forward.

    matmul_dtype: jnp.float32 (default — matches the torch float32 reference)
        or jnp.bfloat16 (≈3x fewer MXU cycles on v6e/v7x and half the signal
        DMA bytes; small DFT precision change — validate against the torch
        reference before enabling).
    """
    n_samp = outputs.shape[-1]
    t_eff = min(n_samp, N)          # rfft(n=N) truncates / zero-pads to N samples
    n_rfft = N // 2 + 1
    wind_sz = int(N / 256)

    # Static band configuration (same math as the torch module).
    f = np.linspace(0.0, Fs / 2.0, n_rfft).astype(np.float32)
    min_idx = int(np.argmin(np.abs(f - pulse_band[0])))
    max_idx = int(np.argmin(np.abs(f - pulse_band[1])))
    # NOTE: torch's negative-index slicing quirk when min_idx < wind_sz is not
    # replicated; it cannot occur with the default N / Fs / pulse_band.

    # Only bins < max_idx + wind_sz are touched; round up to a lane multiple.
    needed = min(max_idx + wind_sz, n_rfft)
    kfreq = _round_up(max(needed, 1), 128)
    idx_bits = (kfreq - 1).bit_length()

    dtype = jnp.dtype(matmul_dtype)
    basis = _dft_basis(t_eff, N, kfreq, n_rfft, dtype.name)      # (2K, T), cached

    out2 = jnp.reshape(outputs, (-1, n_samp))[:, :t_eff].astype(jnp.float32)
    tgt2 = jnp.reshape(targets, (-1, n_samp))[:, :t_eff].astype(jnp.float32)
    b = out2.shape[0]

    # Batch tiling: Bm rows per grid step; multiple of 128 keeps the lane
    # slices of the fused matmul result tile-aligned and fills MXU N-tiles.
    bm = min(int(block_rows), _round_up(b, 128))
    bm = _round_up(bm, 128)
    b_pad = _round_up(b, bm)
    nt = b_pad // bm

    if b_pad != b:
        pad = jnp.zeros((b_pad - b, t_eff), dtype=out2.dtype)
        out2 = jnp.concatenate([out2, pad], axis=0)
        tgt2 = jnp.concatenate([tgt2, pad], axis=0)

    # Per-tile signal slab with batch on the lane axis:
    # sig[i, :, :bm] = outputs tile i (time major), sig[i, :, bm:] = targets tile i.
    out3 = jnp.transpose(jnp.reshape(out2, (nt, bm, t_eff)), (0, 2, 1))
    tgt3 = jnp.transpose(jnp.reshape(tgt2, (nt, bm, t_eff)), (0, 2, 1))
    sig = jnp.concatenate([out3, tgt3], axis=-1).astype(dtype)   # (nt, T, 2*bm)

    kernel = functools.partial(
        _snr_kernel, bm=bm, kfreq=kfreq, min_idx=min_idx, max_idx=max_idx,
        wind_sz=wind_sz, idx_bits=idx_bits)

    losses = pl.pallas_call(
        kernel,
        out_shape=jax.ShapeDtypeStruct((1, b_pad), jnp.float32),
        grid=(nt,),
        in_specs=[
            # (T, 2*bm) signal tile per grid step.
            pl.BlockSpec((None, t_eff, 2 * bm), lambda i: (i, 0, 0)),
            # DFT basis: same block every step -> stays resident in VMEM.
            pl.BlockSpec((2 * kfreq, t_eff), lambda i: (0, 0)),
        ],
        out_specs=pl.BlockSpec((1, bm), lambda i: (0, i)),
        compiler_params=pltpu.CompilerParams(
            dimension_semantics=("parallel",),          # v7x: shard over both TCs
            vmem_limit_bytes=32 * 1024 * 1024),         # ~8 MiB/step actual
    )(sig, basis)

    # torch.mean over the real (non-padded) rows.
    return jnp.mean(losses[0, :b])


if __name__ == "__main__":
    key = jax.random.PRNGKey(0)
    k1, k2 = jax.random.split(key)

    # Arbitrary leading dims get flattened to (-1, N_samp), as in the module:
    # here (batch=2, channels=4, samples=128).
    B, C, T = 2, 4, 128
    outputs = jax.random.normal(k1, (B, C, T), dtype=jnp.float32)
    targets = jax.random.normal(k2, (B, C, T), dtype=jnp.float32)

    loss = snr_loss_db_signals(outputs, targets, Fs=30)
    jax.block_until_ready(loss)
    print("KERNEL_OK")
</pallas_src>

<mosaic_0001>
module attributes {stable_mosaic.version = 11 : i64} {
  func.func @_snr_kernel(%arg0: i32, %arg1: memref<1x128x256xf32, #tpu.memory_space<vmem>>, %arg2: memref<256x128xf32, #tpu.memory_space<vmem>>, %arg3: memref<1x128xf32, #tpu.memory_space<vmem>>) attributes {dimension_semantics = [#tpu.dimension_semantics<parallel>], iteration_bounds = array<i64: 1>, scalar_prefetch = 0 : i64, scratch_operands = 0 : i64, tpu.core_type = #tpu.core_type<tc>, window_params = [{transform_indices = @transform_0, window_bounds = array<i64: 1, 128, 256>}, {pipeline_mode = #tpu.pipeline_mode<synchronous>, transform_indices = @transform_1, window_bounds = array<i64: 256, 128>}, {transform_indices = @transform_2, window_bounds = array<i64: 1, 128>}]} {
    %c0 = arith.constant 0 : index
    %c0_0 = arith.constant 0 : index
    %0 = vector.load %arg2[%c0, %c0_0] : memref<256x128xf32, #tpu.memory_space<vmem>>, vector<256x128xf32>
    %c0_1 = arith.constant 0 : index
    %c0_2 = arith.constant 0 : index
    %c0_3 = arith.constant 0 : index
    %1 = vector.load %arg1[%c0_1, %c0_2, %c0_3] : memref<1x128x256xf32, #tpu.memory_space<vmem>>, vector<1x128x256xf32>
    %2 = vector.shape_cast %1 : vector<1x128x256xf32> to vector<128x256xf32>
    %cst = arith.constant dense<0.000000e+00> : vector<256x256xf32>
    %3 = tpu.matmul %0, %2, %cst {dimension_numbers = #tpu.dot_dimension_numbers<[1], [0], [0], [1], [0, 0, 1, 1], [], []>} : vector<256x128xf32>, vector<128x256xf32>, vector<256x256xf32> -> vector<256x256xf32>
    %4 = vector.extract_strided_slice %3 {offsets = [0, 0], sizes = [128, 128], strides = [1, 1]} : vector<256x256xf32> to vector<128x128xf32>
    %5 = vector.extract_strided_slice %3 {offsets = [128, 0], sizes = [128, 128], strides = [1, 1]} : vector<256x256xf32> to vector<128x128xf32>
    %6 = vector.extract_strided_slice %3 {offsets = [0, 128], sizes = [128, 128], strides = [1, 1]} : vector<256x256xf32> to vector<128x128xf32>
    %7 = vector.extract_strided_slice %3 {offsets = [128, 128], sizes = [128, 128], strides = [1, 1]} : vector<256x256xf32> to vector<128x128xf32>
    %8 = arith.mulf %4, %4 : vector<128x128xf32>
    %9 = arith.mulf %5, %5 : vector<128x128xf32>
    %10 = arith.addf %8, %9 : vector<128x128xf32>
    %11 = arith.mulf %6, %6 : vector<128x128xf32>
    %12 = arith.mulf %7, %7 : vector<128x128xf32>
    %13 = arith.addf %11, %12 : vector<128x128xf32>
    %14 = tpu.iota {dimensions = array<i32: 0>} : vector<128x128xi32>
    %c26_i32 = arith.constant 26 : i32
    %15 = vector.broadcast %c26_i32 : i32 to vector<128x128xi32>
    %16 = arith.cmpi sge, %14, %15 : vector<128x128xi32>
    %c102_i32 = arith.constant 102 : i32
    %17 = vector.broadcast %c102_i32 : i32 to vector<128x128xi32>
    %18 = arith.cmpi slt, %14, %17 : vector<128x128xi32>
    %19 = arith.andi %16, %18 : vector<128x128xi1>
    %20 = tpu.bitcast %13 : vector<128x128xf32> -> vector<128x128xi32>
    %c-128_i32 = arith.constant -128 : i32
    %21 = vector.broadcast %c-128_i32 : i32 to vector<128x128xi32>
    %22 = arith.andi %20, %21 : vector<128x128xi32>
    %c127_i32 = arith.constant 127 : i32
    %23 = vector.broadcast %c127_i32 : i32 to vector<128x128xi32>
    %24 = arith.subi %23, %14 : vector<128x128xi32>
    %25 = arith.ori %22, %24 : vector<128x128xi32>
    %c-1_i32 = arith.constant -1 : i32
    %26 = vector.broadcast %c-1_i32 : i32 to vector<128x128xi32>
    %27 = arith.select %19, %25, %26 : vector<128x128xi1>, vector<128x128xi32>
    %cst_4 = arith.constant dense<-2147483648> : vector<128xi32>
    %28 = vector.multi_reduction <maxsi>, %27, %cst_4 [0] : vector<128x128xi32> to vector<128xi32>
    %29 = vector.shape_cast %28 : vector<128xi32> to vector<1x128xi32>
    %c127_i32_5 = arith.constant 127 : i32
    %30 = vector.broadcast %c127_i32_5 : i32 to vector<1x128xi32>
    %31 = arith.andi %29, %30 : vector<1x128xi32>
    %c127_i32_6 = arith.constant 127 : i32
    %32 = vector.broadcast %c127_i32_6 : i32 to vector<1x128xi32>
    %33 = arith.subi %32, %31 : vector<1x128xi32>
    %c4_i32 = arith.constant 4 : i32
    %34 = vector.broadcast %c4_i32 : i32 to vector<1x128xi32>
    %35 = arith.subi %33, %34 : vector<1x128xi32>
    %c4_i32_7 = arith.constant 4 : i32
    %36 = vector.broadcast %c4_i32_7 : i32 to vector<1x128xi32>
    %37 = arith.addi %33, %36 : vector<1x128xi32>
    %38 = vector.broadcast %35 : vector<1x128xi32> to vector<128x128xi32>
    %39 = arith.cmpi sge, %14, %38 : vector<128x128xi32>
    %40 = vector.broadcast %37 : vector<1x128xi32> to vector<128x128xi32>
    %41 = arith.cmpi slt, %14, %40 : vector<128x128xi32>
    %42 = arith.andi %39, %41 : vector<128x128xi1>
    %cst_8 = arith.constant dense<true> : vector<128x128xi1>
    %43 = arith.xori %42, %cst_8 : vector<128x128xi1>
    %44 = arith.andi %19, %43 : vector<128x128xi1>
    %cst_9 = arith.constant 0.000000e+00 : f32
    %45 = vector.broadcast %cst_9 : f32 to vector<128x128xf32>
    %46 = arith.select %42, %10, %45 : vector<128x128xi1>, vector<128x128xf32>
    %cst_10 = arith.constant dense<0.000000e+00> : vector<128xf32>
    %47 = vector.multi_reduction <add>, %46, %cst_10 [0] : vector<128x128xf32> to vector<128xf32>
    %48 = vector.shape_cast %47 : vector<128xf32> to vector<1x128xf32>
    %49 = arith.select %44, %10, %45 : vector<128x128xi1>, vector<128x128xf32>
    %cst_11 = arith.constant dense<0.000000e+00> : vector<128xf32>
    %50 = vector.multi_reduction <add>, %49, %cst_11 [0] : vector<128x128xf32> to vector<128xf32>
    %51 = vector.shape_cast %50 : vector<128xf32> to vector<1x128xf32>
    %cst_12 = arith.constant 1.000000e-07 : f32
    %52 = vector.broadcast %cst_12 : f32 to vector<1x128xf32>
    %53 = arith.addf %51, %52 : vector<1x128xf32>
    %54 = arith.divf %48, %53 : vector<1x128xf32>
    %55 = math.log %54 : vector<1x128xf32>
    %cst_13 = arith.constant 0.434294492 : f32
    %56 = vector.broadcast %cst_13 : f32 to vector<1x128xf32>
    %57 = arith.mulf %55, %56 : vector<1x128xf32>
    %cst_14 = arith.constant -1.000000e+01 : f32
    %58 = vector.broadcast %cst_14 : f32 to vector<1x128xf32>
    %59 = arith.mulf %58, %57 : vector<1x128xf32>
    %c0_15 = arith.constant 0 : index
    %c0_16 = arith.constant 0 : index
    %60 = vector.load %arg3[%c0_15, %c0_16] : memref<1x128xf32, #tpu.memory_space<vmem>>, vector<1x128xf32>
    tpu.vector_store %arg3[%c0_15, %c0_16], %59 {strides = array<i32>} : memref<1x128xf32, #tpu.memory_space<vmem>>, vector<1x128xf32>,
    return
  }
  func.func @transform_0(%arg0: i32) -> (i32, i32, i32) {
    %c0_i32 = arith.constant 0 : i32
    %c0_i32_0 = arith.constant 0 : i32
    %c0_i32_1 = arith.constant 0 : i32
    return %arg0, %c0_i32, %c0_i32_0 : i32, i32, i32
  }
  func.func @transform_1(%arg0: i32) -> (i32, i32) {
    %c0_i32 = arith.constant 0 : i32
    %c0_i32_0 = arith.constant 0 : i32
    %c0_i32_1 = arith.constant 0 : i32
    return %c0_i32, %c0_i32_0 : i32, i32
  }
  func.func @transform_2(%arg0: i32) -> (i32, i32) {
    %c0_i32 = arith.constant 0 : i32
    %c0_i32_0 = arith.constant 0 : i32
    return %c0_i32, %arg0 : i32, i32
  }
}

</mosaic_0001>

<llo_original>
// kernel: tpu_custom_call.1
$region0: #{tpu_custom_call.1}
  #allocation0 [shape = 'u32[]', space=smem, size = 0x4, offset = 0x4, fixed_abs, tag = 'smem constant byte address 0x4 - core index']
  #allocation1 [shape = 'u32[144,128]{1,0:T(1,128)}', space=vmem, size = 0x12000, scoped, tag = 'internal scratch']
  %s0 = inlined_call_operand.hbm [shape: f32[1,128,256], index: 0, kind: input, shape index: {}]
  %s1 = inlined_call_operand.hbm [shape: f32[256,128], index: 1, kind: input, shape index: {}]
  %s2 = inlined_call_operand.hbm [shape: f32[1,128], index: 2, kind: output, shape index: {}]
  %s3 = sld [smem:[#allocation0]]
  $region26: #{tpu_custom_call.1} parent=0
    _
  %s5 = ssub.s32 1, %s3
  %s6 = scalar_select 0, %s5, %s3
  $region1: #{tpu_custom_call.1} parent=0
    #allocation2 [shape = 'u8[131072]{0}', space=vmem, size = 0x20000, scoped, tag = 'input window, operand 0, single buffered']
    #allocation3 [shape = 's32[1]{0}', space=sflag, size = 0x4, scoped, tag = 'scoped memory for tpu_custom_call.1']
    #allocation4 [shape = 's32[1]{0}', space=sflag, size = 0x4, scoped, tag = 'scoped memory for tpu_custom_call.1']
    #allocation5 [shape = 'u8[131072]{0}', space=vmem, size = 0x20000, scoped, tag = 'input window, operand 1, single buffered']
    #allocation6 [shape = 's32[1]{0}', space=sflag, size = 0x4, scoped, tag = 'scoped memory for tpu_custom_call.1']
    #allocation7 [shape = 'u8[512]{0}', space=vmem, size = 0x400, scoped, tag = 'output window, operand 0, single buffered']
    %7 = vsyncpa [#allocation3], 0
    %8 = vsyncpa [#allocation6], 0
    %9 = vsyncpa [#allocation4], 0
    // Predicated region
    $region2: #{tpu_custom_call.1} parent=1 // pred_check
      _
    $region3: #{tpu_custom_call.1} parent=1 // pred_check_branch
      %11 = sbr.rel (0) target = $region5
    $region4: #{tpu_custom_call.1} parent=1 // pred_region
      %s13 = ssub.s32 4096, 4096
      %14 = vsyncadd [#allocation3], %s13
      %s15 = sshll.u32 [#allocation2], 4
      %s16 = int_to_ptr.vmem [resolvable:$true] %s15
      %21 = dma.hbm_to_vmem [thread:$0]  %s0, 4096, %s16, [#allocation3], 256, 256, 16
    $region5: #{tpu_custom_call.1} parent=1 // pred_fallthru
      _
    // Predicated region
    $region6: #{tpu_custom_call.1} parent=1 // pred_check
      _
    $region7: #{tpu_custom_call.1} parent=1 // pred_check_branch
      %23 = sbr.rel (0) target = $region9
    $region8: #{tpu_custom_call.1} parent=1 // pred_region
      %s25 = ssub.s32 4096, 4096
      %26 = vsyncadd [#allocation6], %s25
      %s27 = sshll.u32 [#allocation5], 4
      %s28 = int_to_ptr.vmem [resolvable:$true] %s27
      %33 = dma.hbm_to_vmem [thread:$0]  %s1, 4096, %s28, [#allocation6], 128, 128, 8
    $region9: #{tpu_custom_call.1} parent=1 // pred_fallthru
      _
    // Predicated region
    $region10: #{tpu_custom_call.1} parent=1 // pred_check
      _
    $region11: #{tpu_custom_call.1} parent=1 // pred_check_branch
      %35 = sbr.rel (0) target = $region13
    $region12: #{tpu_custom_call.1} parent=1 // pred_region
      %36 = dma.done [#allocation3], 4096
    $region13: #{tpu_custom_call.1} parent=1 // pred_fallthru
      _
    // Predicated region
    $region14: #{tpu_custom_call.1} parent=1 // pred_check
      _
    $region15: #{tpu_custom_call.1} parent=1 // pred_check_branch
      %38 = sbr.rel (0) target = $region17
    $region16: #{tpu_custom_call.1} parent=1 // pred_region
      %39 = dma.done [#allocation6], 4096
    $region17: #{tpu_custom_call.1} parent=1 // pred_fallthru
      _
    %v40 = vld [vmem:[#allocation5] sm:$0xff]
    %v41 = vld [vmem:[#allocation5 + $0x8] sm:$0xff]
    %v42 = vld [vmem:[#allocation5 + $0x10] sm:$0xff]
    %v43 = vld [vmem:[#allocation5 + $0x18] sm:$0xff]
    %v44 = vld [vmem:[#allocation5 + $0x20] sm:$0xff]
    %v45 = vld [vmem:[#allocation5 + $0x28] sm:$0xff]
    %v46 = vld [vmem:[#allocation5 + $0x30] sm:$0xff]
    %v47 = vld [vmem:[#allocation5 + $0x38] sm:$0xff]
    %v48 = vld [vmem:[#allocation5 + $0x40] sm:$0xff]
    %v49 = vld [vmem:[#allocation5 + $0x48] sm:$0xff]
    %v50 = vld [vmem:[#allocation5 + $0x50] sm:$0xff]
    %v51 = vld [vmem:[#allocation5 + $0x58] sm:$0xff]
    %v52 = vld [vmem:[#allocation5 + $0x60] sm:$0xff]
    %v53 = vld [vmem:[#allocation5 + $0x68] sm:$0xff]
    %v54 = vld [vmem:[#allocation5 + $0x70] sm:$0xff]
    %v55 = vld [vmem:[#allocation5 + $0x78] sm:$0xff]
    %v56 = vld [vmem:[#allocation5 + $0x80] sm:$0xff]
    %v57 = vld [vmem:[#allocation5 + $0x88] sm:$0xff]
    %v58 = vld [vmem:[#allocation5 + $0x90] sm:$0xff]
    %v59 = vld [vmem:[#allocation5 + $0x98] sm:$0xff]
    %v60 = vld [vmem:[#allocation5 + $0xa0] sm:$0xff]
    %v61 = vld [vmem:[#allocation5 + $0xa8] sm:$0xff]
    %v62 = vld [vmem:[#allocation5 + $0xb0] sm:$0xff]
    %v63 = vld [vmem:[#allocation5 + $0xb8] sm:$0xff]
    %v64 = vld [vmem:[#allocation5 + $0xc0] sm:$0xff]
    %v65 = vld [vmem:[#allocation5 + $0xc8] sm:$0xff]
    %v66 = vld [vmem:[#allocation5 + $0xd0] sm:$0xff]
    %v67 = vld [vmem:[#allocation5 + $0xd8] sm:$0xff]
    %v68 = vld [vmem:[#allocation5 + $0xe0] sm:$0xff]
    %v69 = vld [vmem:[#allocation5 + $0xe8] sm:$0xff]
    %v70 = vld [vmem:[#allocation5 + $0xf0] sm:$0xff]
    %v71 = vld [vmem:[#allocation5 + $0xf8] sm:$0xff]
    %v72 = vld [vmem:[#allocation2] sm:$0xff]
    %v73 = vld [vmem:[#allocation2 + $0x8] sm:$0xff]
    %v74 = vld [vmem:[#allocation2 + $0x10] sm:$0xff]
    %v75 = vld [vmem:[#allocation2 + $0x18] sm:$0xff]
    %v76 = vld [vmem:[#allocation2 + $0x20] sm:$0xff]
    %v77 = vld [vmem:[#allocation2 + $0x28] sm:$0xff]
    %v78 = vld [vmem:[#allocation2 + $0x30] sm:$0xff]
    %v79 = vld [vmem:[#allocation2 + $0x38] sm:$0xff]
    %v80 = vld [vmem:[#allocation2 + $0x40] sm:$0xff]
    %v81 = vld [vmem:[#allocation2 + $0x48] sm:$0xff]
    %v82 = vld [vmem:[#allocation2 + $0x50] sm:$0xff]
    %v83 = vld [vmem:[#allocation2 + $0x58] sm:$0xff]
    %v84 = vld [vmem:[#allocation2 + $0x60] sm:$0xff]
    %v85 = vld [vmem:[#allocation2 + $0x68] sm:$0xff]
    %v86 = vld [vmem:[#allocation2 + $0x70] sm:$0xff]
    %v87 = vld [vmem:[#allocation2 + $0x78] sm:$0xff]
    %v88 = vld [vmem:[#allocation2 + $0x80] sm:$0xff]
    %v89 = vld [vmem:[#allocation2 + $0x88] sm:$0xff]
    %v90 = vld [vmem:[#allocation2 + $0x90] sm:$0xff]
    %v91 = vld [vmem:[#allocation2 + $0x98] sm:$0xff]
    %v92 = vld [vmem:[#allocation2 + $0xa0] sm:$0xff]
    %v93 = vld [vmem:[#allocation2 + $0xa8] sm:$0xff]
    %v94 = vld [vmem:[#allocation2 + $0xb0] sm:$0xff]
    %v95 = vld [vmem:[#allocation2 + $0xb8] sm:$0xff]
    %v96 = vld [vmem:[#allocation2 + $0xc0] sm:$0xff]
    %v97 = vld [vmem:[#allocation2 + $0xc8] sm:$0xff]
    %v98 = vld [vmem:[#allocation2 + $0xd0] sm:$0xff]
    %v99 = vld [vmem:[#allocation2 + $0xd8] sm:$0xff]
    %v100 = vld [vmem:[#allocation2 + $0xe0] sm:$0xff]
    %v101 = vld [vmem:[#allocation2 + $0xe8] sm:$0xff]
    %v102 = vld [vmem:[#allocation2 + $0xf0] sm:$0xff]
    %v103 = vld [vmem:[#allocation2 + $0xf8] sm:$0xff]
    %104 = vmatprep.subr.mxu0 %v103
    %105 = vmatpush1.msra.mxu0 %v102
    %106 = vmatprep.subr.mxu0 %v101
    %107 = vmatpush1.msra.mxu0 %v100
    %108 = vmatprep.subr.mxu0 %v99
    %109 = vmatpush1.msra.mxu0 %v98
    %110 = vmatprep.subr.mxu0 %v97
    %111 = vmatpush1.msra.mxu0 %v96
    %112 = vmatprep.subr.mxu0 %v95
    %113 = vmatpush1.msra.mxu0 %v94
    %114 = vmatprep.subr.mxu0 %v93
    %115 = vmatpush1.msra.mxu0 %v92
    %116 = vmatprep.subr.mxu0 %v91
    %117 = vmatpush1.msra.mxu0 %v90
    %118 = vmatprep.subr.mxu0 %v89
    %119 = vmatpush1.msra.mxu0 %v88
    %120 = vmatprep.subr.mxu0 %v87
    %121 = vmatpush1.msra.mxu0 %v86
    %122 = vmatprep.subr.mxu0 %v85
    %123 = vmatpush1.msra.mxu0 %v84
    %124 = vmatprep.subr.mxu0 %v83
    %125 = vmatpush1.msra.mxu0 %v82
    %126 = vmatprep.subr.mxu0 %v81
    %127 = vmatpush1.msra.mxu0 %v80
    %128 = vmatprep.subr.mxu0 %v79
    %129 = vmatpush1.msra.mxu0 %v78
    %130 = vmatprep.subr.mxu0 %v77
    %131 = vmatpush1.msra.mxu0 %v76
    %132 = vmatprep.subr.mxu0 %v75
    %133 = vmatpush1.msra.mxu0 %v74
    %134 = vmatprep.subr.mxu0 %v73
    %135 = vmatpush1.msra.mxu0 %v72
    %136 = vmatprep.subr.mxu0 0.0
    %137 = vmatpush2.msra.mxu0 0.0
    %138 = vmatprep.subr.mxu0 0.0
    %139 = vmatpush2.msra.mxu0 0.0
    %140 = vmatprep.subr.mxu0 0.0
    %141 = vmatpush2.msra.mxu0 0.0
    %142 = vmatprep.subr.mxu0 0.0
    %143 = vmatpush2.msra.mxu0 0.0
    %144 = vmatprep.subr.mxu0 0.0
    %145 = vmatpush2.msra.mxu0 0.0
    %146 = vmatprep.subr.mxu0 0.0
    %147 = vmatpush2.msra.mxu0 0.0
    %148 = vmatprep.subr.mxu0 0.0
    %149 = vmatpush2.msra.mxu0 0.0
    %150 = vmatprep.subr.mxu0 0.0
    %151 = vmatpush2.msra.mxu0 0.0
    %152 = vmatprep.subr.mxu0 0.0
    %153 = vmatpush2.msra.mxu0 0.0
    %154 = vmatprep.subr.mxu0 0.0
    %155 = vmatpush2.msra.mxu0 0.0
    %156 = vmatprep.subr.mxu0 0.0
    %157 = vmatpush2.msra.mxu0 0.0
    %158 = vmatprep.subr.mxu0 0.0
    %159 = vmatpush2.msra.mxu0 0.0
    %160 = vmatprep.subr.mxu0 0.0
    %161 = vmatpush2.msra.mxu0 0.0
    %162 = vmatprep.subr.mxu0 0.0
    %163 = vmatpush2.msra.mxu0 0.0
    %164 = vmatprep.subr.mxu0 0.0
    %165 = vmatpush2.msra.mxu0 0.0
    %166 = vmatprep.subr.mxu0 0.0
    %167 = vmatpush2.msra.mxu0 0.0
    %168 = vmatprep.mubr.f32.mxu0 0.0
    %169 = vmatmul.mubr.f32.gmra.mxu0 %v40
    %v170 = vpop.f32.mrf.mxu0
    %v171 = vadd.f32 0.0, %v170
    %v172 = vpop.f32.mrf.mxu0
    %v173 = vadd.f32 0.0, %v172
    %174 = vmatprep.mubr.f32.mxu0 0.0
    %175 = vmatmul.mubr.f32.gmra.mxu0 %v41
    %v176 = vpop.f32.mrf.mxu0
    %v177 = vadd.f32 0.0, %v176
    %v178 = vpop.f32.mrf.mxu0
    %v179 = vadd.f32 0.0, %v178
    %180 = vmatprep.mubr.f32.mxu0 0.0
    %181 = vmatmul.mubr.f32.gmra.mxu0 %v42
    %v182 = vpop.f32.mrf.mxu0
    %v183 = vadd.f32 0.0, %v182
    %v184 = vpop.f32.mrf.mxu0
    %v185 = vadd.f32 0.0, %v184
    %186 = vmatprep.mubr.f32.mxu0 0.0
    %187 = vmatmul.mubr.f32.gmra.mxu0 %v43
    %v188 = vpop.f32.mrf.mxu0
    %v189 = vadd.f32 0.0, %v188
    %v190 = vpop.f32.mrf.mxu0
    %v191 = vadd.f32 0.0, %v190
    %192 = vmatprep.mubr.f32.mxu0 0.0
    %193 = vmatmul.mubr.f32.gmra.mxu0 %v44
    %v194 = vpop.f32.mrf.mxu0
    %v195 = vadd.f32 0.0, %v194
    %v196 = vpop.f32.mrf.mxu0
    %v197 = vadd.f32 0.0, %v196
    %198 = vmatprep.mubr.f32.mxu0 0.0
    %199 = vmatmul.mubr.f32.gmra.mxu0 %v45
    %v200 = vpop.f32.mrf.mxu0
    %v201 = vadd.f32 0.0, %v200
    %v202 = vpop.f32.mrf.mxu0
    %v203 = vadd.f32 0.0, %v202
    %204 = vmatprep.mubr.f32.mxu0 0.0
    %205 = vmatmul.mubr.f32.gmra.mxu0 %v46
    %v206 = vpop.f32.mrf.mxu0
    %v207 = vadd.f32 0.0, %v206
    %v208 = vpop.f32.mrf.mxu0
    %v209 = vadd.f32 0.0, %v208
    %210 = vmatprep.mubr.f32.mxu0 0.0
    %211 = vmatmul.mubr.f32.gmra.mxu0 %v47
    %v212 = vpop.f32.mrf.mxu0
    %v213 = vadd.f32 0.0, %v212
    %v214 = vpop.f32.mrf.mxu0
    %v215 = vadd.f32 0.0, %v214
    %216 = vmatprep.mubr.f32.mxu0 0.0
    %217 = vmatmul.mubr.f32.gmra.mxu0 %v48
    %v218 = vpop.f32.mrf.mxu0
    %v219 = vadd.f32 0.0, %v218
    %v220 = vpop.f32.mrf.mxu0
    %v221 = vadd.f32 0.0, %v220
    %222 = vmatprep.mubr.f32.mxu0 0.0
    %223 = vmatmul.mubr.f32.gmra.mxu0 %v49
    %v224 = vpop.f32.mrf.mxu0
    %v225 = vadd.f32 0.0, %v224
    %v226 = vpop.f32.mrf.mxu0
    %v227 = vadd.f32 0.0, %v226
    %228 = vmatprep.mubr.f32.mxu0 0.0
    %229 = vmatmul.mubr.f32.gmra.mxu0 %v50
    %v230 = vpop.f32.mrf.mxu0
    %v231 = vadd.f32 0.0, %v230
    %v232 = vpop.f32.mrf.mxu0
    %v233 = vadd.f32 0.0, %v232
    %234 = vmatprep.mubr.f32.mxu0 0.0
    %235 = vmatmul.mubr.f32.gmra.mxu0 %v51
    %v236 = vpop.f32.mrf.mxu0
    %v237 = vadd.f32 0.0, %v236
    %v238 = vpop.f32.mrf.mxu0
    %v239 = vadd.f32 0.0, %v238
    %240 = vmatprep.mubr.f32.mxu0 0.0
    %241 = vmatmul.mubr.f32.gmra.mxu0 %v52
    %v242 = vpop.f32.mrf.mxu0
    %v243 = vadd.f32 0.0, %v242
    %v244 = vpop.f32.mrf.mxu0
    %v245 = vadd.f32 0.0, %v244
    %246 = vmatprep.mubr.f32.mxu0 0.0
    %247 = vmatmul.mubr.f32.gmra.mxu0 %v53
    %v248 = vpop.f32.mrf.mxu0
    %v249 = vadd.f32 0.0, %v248
    %v250 = vpop.f32.mrf.mxu0
    %v251 = vadd.f32 0.0, %v250
    %252 = vmatprep.mubr.f32.mxu0 0.0
    %253 = vmatmul.mubr.f32.gmra.mxu0 %v54
    %v254 = vpop.f32.mrf.mxu0
    %v255 = vadd.f32 0.0, %v254
    %v256 = vpop.f32.mrf.mxu0
    %v257 = vadd.f32 0.0, %v256
    %258 = vmatprep.mubr.f32.mxu0 0.0
    %259 = vmatmul.mubr.f32.gmra.mxu0 %v55
    %v260 = vpop.f32.mrf.mxu0
    %v261 = vadd.f32 0.0, %v260
    %v262 = vpop.f32.mrf.mxu0
    %v263 = vadd.f32 0.0, %v262
    %264 = vmatprep.mubr.f32.mxu0 0.0
    %265 = vmatmul.mubr.f32.gmra.mxu0 %v56
    %v266 = vpop.f32.mrf.mxu0
    %v267 = vadd.f32 0.0, %v266
    %v268 = vpop.f32.mrf.mxu0
    %v269 = vadd.f32 0.0, %v268
    %270 = vmatprep.mubr.f32.mxu0 0.0
    %271 = vmatmul.mubr.f32.gmra.mxu0 %v57
    %v272 = vpop.f32.mrf.mxu0
    %v273 = vadd.f32 0.0, %v272
    %v274 = vpop.f32.mrf.mxu0
    %v275 = vadd.f32 0.0, %v274
    %276 = vmatprep.mubr.f32.mxu0 0.0
    %277 = vmatmul.mubr.f32.gmra.mxu0 %v58
    %v278 = vpop.f32.mrf.mxu0
    %v279 = vadd.f32 0.0, %v278
    %v280 = vpop.f32.mrf.mxu0
    %v281 = vadd.f32 0.0, %v280
    %282 = vmatprep.mubr.f32.mxu0 0.0
    %283 = vmatmul.mubr.f32.gmra.mxu0 %v59
    %v284 = vpop.f32.mrf.mxu0
    %v285 = vadd.f32 0.0, %v284
    %v286 = vpop.f32.mrf.mxu0
    %v287 = vadd.f32 0.0, %v286
    %288 = vmatprep.mubr.f32.mxu0 0.0
    %289 = vmatmul.mubr.f32.gmra.mxu0 %v60
    %v290 = vpop.f32.mrf.mxu0
    %v291 = vadd.f32 0.0, %v290
    %v292 = vpop.f32.mrf.mxu0
    %v293 = vadd.f32 0.0, %v292
    %294 = vmatprep.mubr.f32.mxu0 0.0
    %295 = vmatmul.mubr.f32.gmra.mxu0 %v61
    %v296 = vpop.f32.mrf.mxu0
    %v297 = vadd.f32 0.0, %v296
    %v298 = vpop.f32.mrf.mxu0
    %v299 = vadd.f32 0.0, %v298
    %300 = vmatprep.mubr.f32.mxu0 0.0
    %301 = vmatmul.mubr.f32.gmra.mxu0 %v62
    %v302 = vpop.f32.mrf.mxu0
    %v303 = vadd.f32 0.0, %v302
    %v304 = vpop.f32.mrf.mxu0
    %v305 = vadd.f32 0.0, %v304
    %306 = vmatprep.mubr.f32.mxu0 0.0
    %307 = vmatmul.mubr.f32.gmra.mxu0 %v63
    %v308 = vpop.f32.mrf.mxu0
    %v309 = vadd.f32 0.0, %v308
    %v310 = vpop.f32.mrf.mxu0
    %v311 = vadd.f32 0.0, %v310
    %312 = vmatprep.mubr.f32.mxu0 0.0
    %313 = vmatmul.mubr.f32.gmra.mxu0 %v64
    %v314 = vpop.f32.mrf.mxu0
    %v315 = vadd.f32 0.0, %v314
    %v316 = vpop.f32.mrf.mxu0
    %v317 = vadd.f32 0.0, %v316
    %318 = vmatprep.mubr.f32.mxu0 0.0
    %319 = vmatmul.mubr.f32.gmra.mxu0 %v65
    %v320 = vpop.f32.mrf.mxu0
    %v321 = vadd.f32 0.0, %v320
    %v322 = vpop.f32.mrf.mxu0
    %v323 = vadd.f32 0.0, %v322
    %324 = vmatprep.mubr.f32.mxu0 0.0
    %325 = vmatmul.mubr.f32.gmra.mxu0 %v66
    %v326 = vpop.f32.mrf.mxu0
    %v327 = vadd.f32 0.0, %v326
    %v328 = vpop.f32.mrf.mxu0
    %v329 = vadd.f32 0.0, %v328
    %330 = vmatprep.mubr.f32.mxu0 0.0
    %331 = vmatmul.mubr.f32.gmra.mxu0 %v67
    %v332 = vpop.f32.mrf.mxu0
    %v333 = vadd.f32 0.0, %v332
    %v334 = vpop.f32.mrf.mxu0
    %v335 = vadd.f32 0.0, %v334
    %336 = vmatprep.mubr.f32.mxu0 0.0
    %337 = vmatmul.mubr.f32.gmra.mxu0 %v68
    %v338 = vpop.f32.mrf.mxu0
    %v339 = vadd.f32 0.0, %v338
    %v340 = vpop.f32.mrf.mxu0
    %v341 = vadd.f32 0.0, %v340
    %342 = vmatprep.mubr.f32.mxu0 0.0
    %343 = vmatmul.mubr.f32.gmra.mxu0 %v69
    %v344 = vpop.f32.mrf.mxu0
    %v345 = vadd.f32 0.0, %v344
    %v346 = vpop.f32.mrf.mxu0
    %v347 = vadd.f32 0.0, %v346
    %348 = vmatprep.mubr.f32.mxu0 0.0
    %349 = vmatmul.mubr.f32.gmra.mxu0 %v70
    %v350 = vpop.f32.mrf.mxu0
    %v351 = vadd.f32 0.0, %v350
    %v352 = vpop.f32.mrf.mxu0
    %v353 = vadd.f32 0.0, %v352
    %354 = vmatprep.mubr.f32.mxu0 0.0
    %355 = vmatmul.mubr.f32.gmra.mxu0 %v71
    %v356 = vpop.f32.mrf.mxu0
    %v357 = vadd.f32 0.0, %v356
    %v358 = vpop.f32.mrf.mxu0
    %v359 = vadd.f32 0.0, %v358
    %360 = vdwg.mxu0
    %v361 = vmul.f32 %v171, %v171
    %v362 = vmul.f32 %v177, %v177
    %v363 = vmul.f32 %v183, %v183
    %v364 = vmul.f32 %v189, %v189
    %v365 = vmul.f32 %v195, %v195
    %v366 = vmul.f32 %v201, %v201
    %v367 = vmul.f32 %v207, %v207
    %v368 = vmul.f32 %v213, %v213
    %v369 = vmul.f32 %v219, %v219
    %v370 = vmul.f32 %v225, %v225
    %v371 = vmul.f32 %v231, %v231
    %v372 = vmul.f32 %v237, %v237
    %v373 = vmul.f32 %v243, %v243
    %v374 = vmul.f32 %v249, %v249
    %v375 = vmul.f32 %v255, %v255
    %v376 = vmul.f32 %v261, %v261
    %v377 = vmul.f32 %v267, %v267
    %v378 = vmul.f32 %v273, %v273
    %v379 = vmul.f32 %v279, %v279
    %v380 = vmul.f32 %v285, %v285
    %v381 = vmul.f32 %v291, %v291
    %v382 = vmul.f32 %v297, %v297
    %v383 = vmul.f32 %v303, %v303
    %v384 = vmul.f32 %v309, %v309
    %v385 = vmul.f32 %v315, %v315
    %v386 = vmul.f32 %v321, %v321
    %v387 = vmul.f32 %v327, %v327
    %v388 = vmul.f32 %v333, %v333
    %v389 = vmul.f32 %v339, %v339
    %v390 = vmul.f32 %v345, %v345
    %v391 = vmul.f32 %v351, %v351
    %v392 = vmul.f32 %v357, %v357
    %v393 = vadd.f32 %v361, %v377
    %v394 = vadd.f32 %v362, %v378
    %v395 = vadd.f32 %v363, %v379
    %v396 = vadd.f32 %v364, %v380
    %v397 = vadd.f32 %v365, %v381
    %v398 = vadd.f32 %v366, %v382
    %v399 = vadd.f32 %v367, %v383
    %v400 = vadd.f32 %v368, %v384
    %v401 = vadd.f32 %v369, %v385
    %v402 = vadd.f32 %v370, %v386
    %v403 = vadd.f32 %v371, %v387
    %v404 = vadd.f32 %v372, %v388
    %v405 = vadd.f32 %v373, %v389
    %v406 = vadd.f32 %v374, %v390
    %v407 = vadd.f32 %v375, %v391
    %v408 = vadd.f32 %v376, %v392
    %v409 = vmul.f32 %v173, %v173
    %v410 = vmul.f32 %v179, %v179
    %v411 = vmul.f32 %v185, %v185
    %v412 = vmul.f32 %v191, %v191
    %v413 = vmul.f32 %v197, %v197
    %v414 = vmul.f32 %v203, %v203
    %v415 = vmul.f32 %v209, %v209
    %v416 = vmul.f32 %v215, %v215
    %v417 = vmul.f32 %v221, %v221
    %v418 = vmul.f32 %v227, %v227
    %v419 = vmul.f32 %v233, %v233
    %v420 = vmul.f32 %v239, %v239
    %v421 = vmul.f32 %v245, %v245
    %v422 = vmul.f32 %v251, %v251
    %v423 = vmul.f32 %v257, %v257
    %v424 = vmul.f32 %v263, %v263
    %v425 = vmul.f32 %v269, %v269
    %v426 = vmul.f32 %v275, %v275
    %v427 = vmul.f32 %v281, %v281
    %v428 = vmul.f32 %v287, %v287
    %v429 = vmul.f32 %v293, %v293
    %v430 = vmul.f32 %v299, %v299
    %v431 = vmul.f32 %v305, %v305
    %v432 = vmul.f32 %v311, %v311
    %v433 = vmul.f32 %v317, %v317
    %v434 = vmul.f32 %v323, %v323
    %v435 = vmul.f32 %v329, %v329
    %v436 = vmul.f32 %v335, %v335
    %v437 = vmul.f32 %v341, %v341
    %v438 = vmul.f32 %v347, %v347
    %v439 = vmul.f32 %v353, %v353
    %v440 = vmul.f32 %v359, %v359
    %v441 = vadd.f32 %v409, %v425
    %v442 = vadd.f32 %v410, %v426
    %v443 = vadd.f32 %v411, %v427
    %v444 = vadd.f32 %v412, %v428
    %v445 = vadd.f32 %v413, %v429
    %v446 = vadd.f32 %v414, %v430
    %v447 = vadd.f32 %v415, %v431
    %v448 = vadd.f32 %v416, %v432
    %v449 = vadd.f32 %v417, %v433
    %v450 = vadd.f32 %v418, %v434
    %v451 = vadd.f32 %v419, %v435
    %v452 = vadd.f32 %v420, %v436
    %v453 = vadd.f32 %v421, %v437
    %v454 = vadd.f32 %v422, %v438
    %v455 = vadd.f32 %v423, %v439
    %v456 = vadd.f32 %v424, %v440
    %v457 = vlaneseq
    %v458 = vshrl.u32 %v457, 7
    %v459 = vadd.s32 %v458, 8
    %v460 = vadd.s32 %v458, 16
    %v461 = vadd.s32 %v458, 24
    %v462 = vadd.s32 %v458, 32
    %v463 = vadd.s32 %v458, 40
    %v464 = vadd.s32 %v458, 48
    %v465 = vadd.s32 %v458, 56
    %v466 = vadd.s32 %v458, 64
    %v467 = vadd.s32 %v458, 72
    %v468 = vadd.s32 %v458, 80
    %v469 = vadd.s32 %v458, 88
    %v470 = vadd.s32 %v458, 96
    %v471 = vadd.s32 %v458, 104
    %v472 = vadd.s32 %v458, 112
    %v473 = vadd.s32 %v458, 120
    %vm474 = vcmp.ge.s32.totalorder %v458, 26
    %vm475 = vcmp.ge.s32.totalorder %v459, 26
    %vm476 = vcmp.ge.s32.totalorder %v460, 26
    %vm477 = vcmp.ge.s32.totalorder %v461, 26
    %vm478 = vcmp.ge.s32.totalorder %v462, 26
    %vm479 = vcmp.ge.s32.totalorder %v463, 26
    %vm480 = vcmp.ge.s32.totalorder %v464, 26
    %vm481 = vcmp.ge.s32.totalorder %v465, 26
    %vm482 = vcmp.ge.s32.totalorder %v466, 26
    %vm483 = vcmp.ge.s32.totalorder %v467, 26
    %vm484 = vcmp.ge.s32.totalorder %v468, 26
    %vm485 = vcmp.ge.s32.totalorder %v469, 26
    %vm486 = vcmp.ge.s32.totalorder %v470, 26
    %vm487 = vcmp.ge.s32.totalorder %v471, 26
    %vm488 = vcmp.ge.s32.totalorder %v472, 26
    %vm489 = vcmp.ge.s32.totalorder %v473, 26
    %vm490 = vcmp.lt.s32.totalorder %v458, 102
    %vm491 = vcmp.lt.s32.totalorder %v459, 102
    %vm492 = vcmp.lt.s32.totalorder %v460, 102
    %vm493 = vcmp.lt.s32.totalorder %v461, 102
    %vm494 = vcmp.lt.s32.totalorder %v462, 102
    %vm495 = vcmp.lt.s32.totalorder %v463, 102
    %vm496 = vcmp.lt.s32.totalorder %v464, 102
    %vm497 = vcmp.lt.s32.totalorder %v465, 102
    %vm498 = vcmp.lt.s32.totalorder %v466, 102
    %vm499 = vcmp.lt.s32.totalorder %v467, 102
    %vm500 = vcmp.lt.s32.totalorder %v468, 102
    %vm501 = vcmp.lt.s32.totalorder %v469, 102
    %vm502 = vcmp.lt.s32.totalorder %v470, 102
    %vm503 = vcmp.lt.s32.totalorder %v471, 102
    %vm504 = vcmp.lt.s32.totalorder %v472, 102
    %vm505 = vcmp.lt.s32.totalorder %v473, 102
    %vm506 = vmand %vm474, %vm490
    %vm507 = vmand %vm475, %vm491
    %vm508 = vmand %vm476, %vm492
    %vm509 = vmand %vm477, %vm493
    %vm510 = vmand %vm478, %vm494
    %vm511 = vmand %vm479, %vm495
    %vm512 = vmand %vm480, %vm496
    %vm513 = vmand %vm481, %vm497
    %vm514 = vmand %vm482, %vm498
    %vm515 = vmand %vm483, %vm499
    %vm516 = vmand %vm484, %vm500
    %vm517 = vmand %vm485, %vm501
    %vm518 = vmand %vm486, %vm502
    %vm519 = vmand %vm487, %vm503
    %vm520 = vmand %vm488, %vm504
    %vm521 = vmand %vm489, %vm505
    %v538 = vand.u32 %v441, 4294967168
    %v539 = vand.u32 %v442, 4294967168
    %v540 = vand.u32 %v443, 4294967168
    %v541 = vand.u32 %v444, 4294967168
    %v542 = vand.u32 %v445, 4294967168
    %v543 = vand.u32 %v446, 4294967168
    %v544 = vand.u32 %v447, 4294967168
    %v545 = vand.u32 %v448, 4294967168
    %v546 = vand.u32 %v449, 4294967168
    %v547 = vand.u32 %v450, 4294967168
    %v548 = vand.u32 %v451, 4294967168
    %v549 = vand.u32 %v452, 4294967168
    %v550 = vand.u32 %v453, 4294967168
    %v551 = vand.u32 %v454, 4294967168
    %v552 = vand.u32 %v455, 4294967168
    %v553 = vand.u32 %v456, 4294967168
    %v554 = vsub.s32 127, %v458
    %v555 = vsub.s32 127, %v459
    %v556 = vsub.s32 127, %v460
    %v557 = vsub.s32 127, %v461
    %v558 = vsub.s32 127, %v462
    %v559 = vsub.s32 127, %v463
    %v560 = vsub.s32 127, %v464
    %v561 = vsub.s32 127, %v465
    %v562 = vsub.s32 127, %v466
    %v563 = vsub.s32 127, %v467
    %v564 = vsub.s32 127, %v468
    %v565 = vsub.s32 127, %v469
    %v566 = vsub.s32 127, %v470
    %v567 = vsub.s32 127, %v471
    %v568 = vsub.s32 127, %v472
    %v569 = vsub.s32 127, %v473
    %v570 = vor.u32 %v538, %v554
    %v571 = vor.u32 %v539, %v555
    %v572 = vor.u32 %v540, %v556
    %v573 = vor.u32 %v541, %v557
    %v574 = vor.u32 %v542, %v558
    %v575 = vor.u32 %v543, %v559
    %v576 = vor.u32 %v544, %v560
    %v577 = vor.u32 %v545, %v561
    %v578 = vor.u32 %v546, %v562
    %v579 = vor.u32 %v547, %v563
    %v580 = vor.u32 %v548, %v564
    %v581 = vor.u32 %v549, %v565
    %v582 = vor.u32 %v550, %v566
    %v583 = vor.u32 %v551, %v567
    %v584 = vor.u32 %v552, %v568
    %v585 = vor.u32 %v553, %v569
    %v586 = vsel %vm506, %v570, 4294967295
    %v587 = vsel %vm507, %v571, 4294967295
    %v588 = vsel %vm508, %v572, 4294967295
    %v589 = vsel %vm509, %v573, 4294967295
    %v590 = vsel %vm510, %v574, 4294967295
    %v591 = vsel %vm511, %v575, 4294967295
    %v592 = vsel %vm512, %v576, 4294967295
    %v593 = vsel %vm513, %v577, 4294967295
    %v594 = vsel %vm514, %v578, 4294967295
    %v595 = vsel %vm515, %v579, 4294967295
    %v596 = vsel %vm516, %v580, 4294967295
    %v597 = vsel %vm517, %v581, 4294967295
    %v598 = vsel %vm518, %v582, 4294967295
    %v599 = vsel %vm519, %v583, 4294967295
    %v600 = vsel %vm520, %v584, 4294967295
    %v601 = vsel %vm521, %v585, 4294967295
    %vm602 = vcmp.gt.s32.totalorder %v586, %v590
    %v603 = vsel %vm602, %v586, %v590
    %vm604 = vcmp.gt.s32.totalorder %v587, %v591
    %v605 = vsel %vm604, %v587, %v591
    %vm606 = vcmp.gt.s32.totalorder %v588, %v592
    %v607 = vsel %vm606, %v588, %v592
    %vm608 = vcmp.gt.s32.totalorder %v589, %v593
    %v609 = vsel %vm608, %v589, %v593
    %vm610 = vcmp.gt.s32.totalorder %v603, %v594
    %v611 = vsel %vm610, %v603, %v594
    %vm612 = vcmp.gt.s32.totalorder %v605, %v595
    %v613 = vsel %vm612, %v605, %v595
    %vm614 = vcmp.gt.s32.totalorder %v607, %v596
    %v615 = vsel %vm614, %v607, %v596
    %vm616 = vcmp.gt.s32.totalorder %v609, %v597
    %v617 = vsel %vm616, %v609, %v597
    %vm618 = vcmp.gt.s32.totalorder %v611, %v598
    %v619 = vsel %vm618, %v611, %v598
    %vm620 = vcmp.gt.s32.totalorder %v613, %v599
    %v621 = vsel %vm620, %v613, %v599
    %vm622 = vcmp.gt.s32.totalorder %v615, %v600
    %v623 = vsel %vm622, %v615, %v600
    %vm624 = vcmp.gt.s32.totalorder %v617, %v601
    %v625 = vsel %vm624, %v617, %v601
    %vm626 = vcmp.gt.s32.totalorder %v619, %v621
    %v627 = vsel %vm626, %v619, %v621
    %vm628 = vcmp.gt.s32.totalorder %v623, %v625
    %v629 = vsel %vm628, %v623, %v625
    %vm630 = vcmp.gt.s32.totalorder %v627, %v629
    %v631 = vsel %vm630, %v627, %v629
    %v632 = vrot.slane %v631, 4
    %vm633 = vcmp.gt.s32.totalorder %v631, %v632
    %v634 = vsel %vm633, %v631, %v632
    %v635 = vrot.slane %v634, 2
    %vm636 = vcmp.gt.s32.totalorder %v634, %v635
    %v637 = vsel %vm636, %v634, %v635
    %v638 = vrot.slane %v637, 1
    %vm639 = vcmp.gt.s32.totalorder %v637, %v638
    %v640 = vsel %vm639, %v637, %v638
    %v641 = vand.u32 %v640, 127
    %v642 = vsub.s32 127, %v641
    %v643 = vsub.s32 %v642, 4
    %v644 = vadd.s32 %v642, 4
    %vm645 = vcmp.ge.s32.totalorder %v458, %v643
    %vm646 = vcmp.ge.s32.totalorder %v459, %v643
    %vm647 = vcmp.ge.s32.totalorder %v460, %v643
    %vm648 = vcmp.ge.s32.totalorder %v461, %v643
    %vm649 = vcmp.ge.s32.totalorder %v462, %v643
    %vm650 = vcmp.ge.s32.totalorder %v463, %v643
    %vm651 = vcmp.ge.s32.totalorder %v464, %v643
    %vm652 = vcmp.ge.s32.totalorder %v465, %v643
    %vm653 = vcmp.ge.s32.totalorder %v466, %v643
    %vm654 = vcmp.ge.s32.totalorder %v467, %v643
    %vm655 = vcmp.ge.s32.totalorder %v468, %v643
    %vm656 = vcmp.ge.s32.totalorder %v469, %v643
    %vm657 = vcmp.ge.s32.totalorder %v470, %v643
    %vm658 = vcmp.ge.s32.totalorder %v471, %v643
    %vm659 = vcmp.ge.s32.totalorder %v472, %v643
    %vm660 = vcmp.ge.s32.totalorder %v473, %v643
    %vm661 = vcmp.lt.s32.totalorder %v458, %v644
    %vm662 = vcmp.lt.s32.totalorder %v459, %v644
    %vm663 = vcmp.lt.s32.totalorder %v460, %v644
    %vm664 = vcmp.lt.s32.totalorder %v461, %v644
    %vm665 = vcmp.lt.s32.totalorder %v462, %v644
    %vm666 = vcmp.lt.s32.totalorder %v463, %v644
    %vm667 = vcmp.lt.s32.totalorder %v464, %v644
    %vm668 = vcmp.lt.s32.totalorder %v465, %v644
    %vm669 = vcmp.lt.s32.totalorder %v466, %v644
    %vm670 = vcmp.lt.s32.totalorder %v467, %v644
    %vm671 = vcmp.lt.s32.totalorder %v468, %v644
    %vm672 = vcmp.lt.s32.totalorder %v469, %v644
    %vm673 = vcmp.lt.s32.totalorder %v470, %v644
    %vm674 = vcmp.lt.s32.totalorder %v471, %v644
    %vm675 = vcmp.lt.s32.totalorder %v472, %v644
    %vm676 = vcmp.lt.s32.totalorder %v473, %v644
    %vm677 = vmand %vm645, %vm661
    %vm678 = vmand %vm646, %vm662
    %vm679 = vmand %vm647, %vm663
    %vm680 = vmand %vm648, %vm664
    %vm681 = vmand %vm649, %vm665
    %vm682 = vmand %vm650, %vm666
    %vm683 = vmand %vm651, %vm667
    %vm684 = vmand %vm652, %vm668
    %vm685 = vmand %vm653, %vm669
    %vm686 = vmand %vm654, %vm670
    %vm687 = vmand %vm655, %vm671
    %vm688 = vmand %vm656, %vm672
    %vm689 = vmand %vm657, %vm673
    %vm690 = vmand %vm658, %vm674
    %vm691 = vmand %vm659, %vm675
    %vm692 = vmand %vm660, %vm676
    %vm693 = vmxor %vm677, 1
    %vm694 = vmxor %vm678, 1
    %vm695 = vmxor %vm679, 1
    %vm696 = vmxor %vm680, 1
    %vm697 = vmxor %vm681, 1
    %vm698 = vmxor %vm682, 1
    %vm699 = vmxor %vm683, 1
    %vm700 = vmxor %vm684, 1
    %vm701 = vmxor %vm685, 1
    %vm702 = vmxor %vm686, 1
    %vm703 = vmxor %vm687, 1
    %vm704 = vmxor %vm688, 1
    %vm705 = vmxor %vm689, 1
    %vm706 = vmxor %vm690, 1
    %vm707 = vmxor %vm691, 1
    %vm708 = vmxor %vm692, 1
    %vm709 = vmand %vm506, %vm693
    %vm710 = vmand %vm507, %vm694
    %vm711 = vmand %vm508, %vm695
    %vm712 = vmand %vm509, %vm696
    %vm713 = vmand %vm510, %vm697
    %vm714 = vmand %vm511, %vm698
    %vm715 = vmand %vm512, %vm699
    %vm716 = vmand %vm513, %vm700
    %vm717 = vmand %vm514, %vm701
    %vm718 = vmand %vm515, %vm702
    %vm719 = vmand %vm516, %vm703
    %vm720 = vmand %vm517, %vm704
    %vm721 = vmand %vm518, %vm705
    %vm722 = vmand %vm519, %vm706
    %vm723 = vmand %vm520, %vm707
    %vm724 = vmand %vm521, %vm708
    %v725 = vsel %vm677, %v393, 0.0
    %v726 = vsel %vm678, %v394, 0.0
    %v727 = vsel %vm679, %v395, 0.0
    %v728 = vsel %vm680, %v396, 0.0
    %v729 = vsel %vm681, %v397, 0.0
    %v730 = vsel %vm682, %v398, 0.0
    %v731 = vsel %vm683, %v399, 0.0
    %v732 = vsel %vm684, %v400, 0.0
    %v733 = vsel %vm685, %v401, 0.0
    %v734 = vsel %vm686, %v402, 0.0
    %v735 = vsel %vm687, %v403, 0.0
    %v736 = vsel %vm688, %v404, 0.0
    %v737 = vsel %vm689, %v405, 0.0
    %v738 = vsel %vm690, %v406, 0.0
    %v739 = vsel %vm691, %v407, 0.0
    %v740 = vsel %vm692, %v408, 0.0
    %v741 = vadd.f32 %v725, %v726
    %v742 = vadd.f32 %v741, %v727
    %v743 = vadd.f32 %v742, %v728
    %v744 = vadd.f32 %v743, %v729
    %v745 = vadd.f32 %v744, %v730
    %v746 = vadd.f32 %v745, %v731
    %v747 = vadd.f32 %v746, %v732
    %v748 = vadd.f32 %v747, %v733
    %v749 = vadd.f32 %v748, %v734
    %v750 = vadd.f32 %v749, %v735
    %v751 = vadd.f32 %v750, %v736
    %v752 = vadd.f32 %v751, %v737
    %v753 = vadd.f32 %v752, %v738
    %v754 = vadd.f32 %v753, %v739
    %v755 = vadd.f32 %v754, %v740
    %v756 = vrot.slane %v755, 4
    %v757 = vadd.f32 %v755, %v756
    %v758 = vrot.slane %v757, 2
    %v759 = vadd.f32 %v757, %v758
    %v760 = vrot.slane %v759, 1
    %v761 = vadd.f32 %v759, %v760
    %v762 = vsel %vm709, %v393, 0.0
    %v763 = vsel %vm710, %v394, 0.0
    %v764 = vsel %vm711, %v395, 0.0
    %v765 = vsel %vm712, %v396, 0.0
    %v766 = vsel %vm713, %v397, 0.0
    %v767 = vsel %vm714, %v398, 0.0
    %v768 = vsel %vm715, %v399, 0.0
    %v769 = vsel %vm716, %v400, 0.0
    %v770 = vsel %vm717, %v401, 0.0
    %v771 = vsel %vm718, %v402, 0.0
    %v772 = vsel %vm719, %v403, 0.0
    %v773 = vsel %vm720, %v404, 0.0
    %v774 = vsel %vm721, %v405, 0.0
    %v775 = vsel %vm722, %v406, 0.0
    %v776 = vsel %vm723, %v407, 0.0
    %v777 = vsel %vm724, %v408, 0.0
    %v778 = vadd.f32 %v762, %v763
    %v779 = vadd.f32 %v778, %v764
    %v780 = vadd.f32 %v779, %v765
    %v781 = vadd.f32 %v780, %v766
    %v782 = vadd.f32 %v781, %v767
    %v783 = vadd.f32 %v782, %v768
    %v784 = vadd.f32 %v783, %v769
    %v785 = vadd.f32 %v784, %v770
    %v786 = vadd.f32 %v785, %v771
    %v787 = vadd.f32 %v786, %v772
    %v788 = vadd.f32 %v787, %v773
    %v789 = vadd.f32 %v788, %v774
    %v790 = vadd.f32 %v789, %v775
    %v791 = vadd.f32 %v790, %v776
    %v792 = vadd.f32 %v791, %v777
    %v793 = vrot.slane %v792, 4
    %v794 = vadd.f32 %v792, %v793
    %v795 = vrot.slane %v794, 2
    %v796 = vadd.f32 %v794, %v795
    %v797 = vrot.slane %v796, 1
    %v798 = vadd.f32 %v796, %v797
    %v799 = vadd.f32 %v798, 1e-07
    %v800 = vrcp.pop %v799
    %v801 = vmul.f32 %v761, %v800
    %v802 = vlog2.pop %v801
    %v803 = vmul.f32 %v802, 0.6931472
    %v804 = vmul.f32 %v803, 0.4342945
    %v805 = vmul.f32 %v804, -10.0
    %806 = vst [vmem:[#allocation7] sm:$0x1] %v805
    // Predicated region
    $region18: #{tpu_custom_call.1} parent=1 // pred_check
      _
    $region19: #{tpu_custom_call.1} parent=1 // pred_check_branch
      %808 = sbr.rel (0) target = $region21
    $region20: #{tpu_custom_call.1} parent=1 // pred_region
      %s810 = ssub.s32 16, 16
      %811 = vsyncadd [#allocation4], %s810
      %s813 = sshll.u32 [#allocation7], 4
      %s814 = int_to_ptr.vmem [resolvable:$true] %s813
      %816 = dma.vmem_to_hbm [thread:$0]  %s814, 16, %s2, [#allocation4]
    $region21: #{tpu_custom_call.1} parent=1 // pred_fallthru
      _
    // Predicated region
    $region22: #{tpu_custom_call.1} parent=1 // pred_check
      _
    $region23: #{tpu_custom_call.1} parent=1 // pred_check_branch
      %818 = sbr.rel (0) target = $region25
    $region24: #{tpu_custom_call.1} parent=1 // pred_region
      %819 = dma.done [#allocation4], 16
    $region25: #{tpu_custom_call.1} parent=1 // pred_fallthru
      _
    %820 = vsyncpa [#allocation3], 1
    %821 = vsyncpa [#allocation6], 1
    %822 = vsyncpa [#allocation4], 1

</llo_original>
